<compile_context>
chip_gen: v5e
topology: v5e:2x2
jax: 0.10.0
libtpu: 0.0.40
codegen_flags: <defaults>
</compile_context>

<pallas_src>
import numpy as np
import jax
import jax.numpy as jnp
from jax.experimental import pallas as pl
from jax.experimental.pallas import tpu as pltpu


def tae_decoder_kernel(x_ref, w_ref, b_ref, o_ref):
    # x_ref: (B, Tp, C)      zero-padded latent, fully resident every grid step
    # w_ref: (D*C, s*F)      fused per-phase tap weights (block-Toeplitz column)
    # b_ref: (1, 1, s*F)     bias tiled across the `stride` phases (kept f32)
    # o_ref: (B, Qt, s*F)    output q-tile for this grid step
    B, Qt, sF = o_ref.shape
    C = x_ref.shape[-1]
    DC = w_ref.shape[0]
    D = DC // C

    q0 = pl.multiple_of(pl.program_id(0) * Qt, 8)

    # im2col window built from VMEM-resident x (no extra HBM traffic):
    #   xwin[b, q, d*C + c] = xpad[b, q0 + q + d, c]
    xwin = jnp.concatenate(
        [x_ref[:, pl.ds(q0 + d, Qt), :] for d in range(D)], axis=-1)      # (B, Qt, D*C) f32

    # Collapse (B, Qt) -> rows (sublane-aligned: Qt is a multiple of 8), cast MXU operands
    # to the compute dtype (bf16 on v6e/v7x), accumulate in f32 on the MXU.
    xrows = xwin.reshape(B * Qt, DC).astype(w_ref.dtype)
    y = jnp.dot(xrows, w_ref[...], preferred_element_type=jnp.float32)    # (B*Qt, s*F) f32

    # f32 epilogue (bias add) then single store of the whole tile.
    o_ref[...] = (y.reshape(B, Qt, sF) + b_ref[...]).astype(o_ref.dtype)


def tae_decoder_forward(x, weight, bias, input_shape, pooling,
                        compute_dtype=jnp.float32):
    """Pallas implementation of TAE_decoder.forward.

    x:      (B, T, n_hidden) float32   (the PyTorch forward() input, pre-permute)
    weight: (n_hidden, feats, 10, 1)   (PyTorch ConvTranspose2d weight layout)
    bias:   (feats,)
    returns (B, input_shape[1], feats, 1)
    """
    B, T, C = x.shape
    L = int(input_shape[1])
    F = int(input_shape[-1])
    K = int(weight.shape[2])
    s = int(pooling)
    # Same floor division as the PyTorch module (`// 2` there as well), so no divergence.
    pad = ((L - 1) * s + K - L) // 2

    # ---- structural geometry (plain Python, done once) --------------------------------
    # output l = q*s + r gets x[t] * W[kh] whenever kh = r + pad - (t - q)*s is in [0, K);
    # the window offsets d = t - q therefore live in [d_min, d_max]:
    d_min = -((-(pad - K + 1)) // s)          # ceil((pad - K + 1) / s)
    d_max = (s - 1 + pad) // s                # floor((s - 1 + pad) / s)
    D = d_max - d_min + 1                     # ~ K/s + 1 shifted copies of x

    # q-range covering l in [0, L), rounded up so tiles are sublane-aligned (multiple of 8)
    Qp = -(-L // s)
    Q8 = ((Qp + 7) // 8) * 8
    if Q8 <= 512:
        q_tile = Q8
    else:
        q_tile = 512
        Q8 = ((Q8 + q_tile - 1) // q_tile) * q_tile
    n_qt = Q8 // q_tile
    Tp = Q8 + D - 1
    sF = s * F
    DC = D * C

    # ---- fused per-phase weights (eliminates the dense G scatter matrix) --------------
    Wk = jnp.transpose(weight[:, :, :, 0], (2, 0, 1))            # (K, C, F)
    row_blocks = []
    for di in range(D):
        cols = []
        for r in range(s):
            kh = r + pad - (d_min + di) * s
            if 0 <= kh < K:
                cols.append(Wk[kh])                              # (C, F)
            else:
                cols.append(jnp.zeros((C, F), weight.dtype))
        row_blocks.append(jnp.concatenate(cols, axis=1))         # (C, s*F)
    Wbig = jnp.concatenate(row_blocks, axis=0).astype(compute_dtype)   # (D*C, s*F)

    # ---- zero-padded latent so every window slice is in range -------------------------
    # xpad[:, i, :] == x[:, i + d_min, :] where valid, 0 otherwise, i in [0, Tp)
    lo = d_min
    pad_left = max(0, -lo)
    pad_right = max(0, lo + Tp - T)
    xz = jnp.pad(x, ((0, 0), (pad_left, pad_right), (0, 0)))
    xpad = jax.lax.dynamic_slice_in_dim(xz, lo + pad_left, Tp, axis=1)   # (B, Tp, C) f32

    # bias tiled over phases, kept f32 for an exact epilogue
    brep = jnp.tile(bias.astype(jnp.float32), s).reshape(1, 1, sF)

    itemsize_out = jnp.dtype(x.dtype).itemsize
    cost = pl.CostEstimate(
        flops=2 * B * Q8 * DC * sF,
        transcendentals=0,
        bytes_accessed=int(xpad.size * xpad.dtype.itemsize
                           + Wbig.size * Wbig.dtype.itemsize
                           + brep.size * brep.dtype.itemsize
                           + B * Q8 * sF * itemsize_out),
    )

    out = pl.pallas_call(
        tae_decoder_kernel,
        out_shape=jax.ShapeDtypeStruct((B, Q8, sF), x.dtype),
        grid_spec=pltpu.PrefetchScalarGridSpec(
            num_scalar_prefetch=0,
            grid=(n_qt,),
            in_specs=[
                pl.BlockSpec((B, Tp, C), lambda i: (0, 0, 0)),   # full padded latent
                pl.BlockSpec((DC, sF), lambda i: (0, 0)),        # fused weights
                pl.BlockSpec((1, 1, sF), lambda i: (0, 0, 0)),   # bias
            ],
            out_specs=pl.BlockSpec((B, q_tile, sF), lambda i: (0, i, 0)),
        ),
        compiler_params=pltpu.CompilerParams(
            dimension_semantics=("parallel",),                   # megacore-shardable q-tiles
            vmem_limit_bytes=32 * 1024 * 1024,                   # explicit, v7x-safe budget
        ),
        cost_estimate=cost,
    )(xpad, Wbig, brep)

    # (B, Q8, s*F) -> (B, Q8*s, F) is a contiguous reshape; slice to L, add trailing dim.
    out_full = out.reshape(B, Q8 * s, F)[:, :L, :]
    return out_full[..., None]                                   # (B, L, F, 1)


def reference_forward(x, weight, bias, input_shape, pooling):
    """Direct (loop-based) numpy reference of the PyTorch forward pass."""
    x = np.asarray(x, dtype=np.float64)
    w = np.asarray(weight, dtype=np.float64)
    b = np.asarray(bias, dtype=np.float64)
    B, T, C = x.shape
    Cin, Cout, K, _ = w.shape
    stride = pooling
    pad = ((input_shape[1] - 1) * stride + K - input_shape[1]) // 2
    H_full = (T - 1) * stride - 2 * pad + K
    out = np.zeros((B, Cout, H_full), dtype=np.float64)
    for bi in range(B):
        for c in range(Cin):
            for f in range(Cout):
                for t in range(T):
                    for k in range(K):
                        h = t * stride - pad + k
                        if 0 <= h < H_full:
                            out[bi, f, h] += x[bi, t, c] * w[c, f, k, 0]
    out = out + b[None, :, None]
    out = out[:, :, : input_shape[1]]                 # [:, :, :input_size[1], :]
    out = np.transpose(out, (0, 2, 1))[..., None]     # permute (0,2,1,3)
    return out.astype(np.float32)


if __name__ == "__main__":
    # Small, self-consistent shapes (latent T == input_shape[1] as in the original test).
    B, SEQ, FEATS = 2, 16, 4
    N_HIDDEN = 8
    POOLING = 2
    K = 10
    input_shape = (B, SEQ, FEATS)

    key = jax.random.PRNGKey(0)
    kx, kw, kb = jax.random.split(key, 3)
    x = jax.random.normal(kx, (B, SEQ, N_HIDDEN), dtype=jnp.float32)
    fan_in = N_HIDDEN * K * 1
    bound = 1.0 / np.sqrt(fan_in)
    weight = jax.random.uniform(kw, (N_HIDDEN, FEATS, K, 1), jnp.float32, -bound, bound)
    bias = jax.random.uniform(kb, (FEATS,), jnp.float32, -bound, bound)

    ref = reference_forward(x, weight, bias, input_shape, POOLING)

    # Exact f32 MXU path (default).
    out_f32 = jax.block_until_ready(
        tae_decoder_forward(x, weight, bias, input_shape, POOLING))
    assert out_f32.shape == (B, SEQ, FEATS, 1), out_f32.shape
    np.testing.assert_allclose(np.asarray(out_f32), ref, rtol=1e-4, atol=1e-4)

    # bf16 MXU operands (v6e/v7x fast path), f32 accumulation + f32 epilogue.
    out_bf16 = jax.block_until_ready(
        tae_decoder_forward(x, weight, bias, input_shape, POOLING,
                            compute_dtype=jnp.bfloat16))
    np.testing.assert_allclose(np.asarray(out_bf16), ref, rtol=2e-2, atol=2e-2)

    print("KERNEL_OK")
</pallas_src>

<mosaic_0001>
module attributes {stable_mosaic.version = 11 : i64} {
  func.func @tae_decoder_kernel(%arg0: i32, %arg1: memref<2x12x8xf32, #tpu.memory_space<vmem>>, %arg2: memref<40x8xf32, #tpu.memory_space<vmem>>, %arg3: memref<1x1x8xf32, #tpu.memory_space<vmem>>, %arg4: memref<2x8x8xf32, #tpu.memory_space<vmem>>) attributes {dimension_semantics = [#tpu.dimension_semantics<parallel>], iteration_bounds = array<i64: 1>, scalar_prefetch = 0 : i64, scratch_operands = 0 : i64, tpu.core_type = #tpu.core_type<tc>, window_params = [{pipeline_mode = #tpu.pipeline_mode<synchronous>, transform_indices = @transform_0, window_bounds = array<i64: 2, 12, 8>}, {pipeline_mode = #tpu.pipeline_mode<synchronous>, transform_indices = @transform_1, window_bounds = array<i64: 40, 8>}, {pipeline_mode = #tpu.pipeline_mode<synchronous>, transform_indices = @transform_2, window_bounds = array<i64: 1, 1, 8>}, {transform_indices = @transform_3, window_bounds = array<i64: 2, 8, 8>}]} {
    %c8_i32 = arith.constant 8 : i32
    %0 = arith.muli %arg0, %c8_i32 : i32
    %1 = tpu.assume_multiple %0, 8 : i32
    %c0_i32 = arith.constant 0 : i32
    %2 = arith.addi %1, %c0_i32 : i32
    %c0 = arith.constant 0 : index
    %3 = arith.index_cast %2 : i32 to index
    %c0_0 = arith.constant 0 : index
    %4 = vector.load %arg1[%c0, %3, %c0_0] : memref<2x12x8xf32, #tpu.memory_space<vmem>>, vector<2x8x8xf32>
    %c1_i32 = arith.constant 1 : i32
    %5 = arith.addi %1, %c1_i32 : i32
    %c0_1 = arith.constant 0 : index
    %6 = arith.index_cast %5 : i32 to index
    %c0_2 = arith.constant 0 : index
    %7 = vector.load %arg1[%c0_1, %6, %c0_2] : memref<2x12x8xf32, #tpu.memory_space<vmem>>, vector<2x8x8xf32>
    %c2_i32 = arith.constant 2 : i32
    %8 = arith.addi %1, %c2_i32 : i32
    %c0_3 = arith.constant 0 : index
    %9 = arith.index_cast %8 : i32 to index
    %c0_4 = arith.constant 0 : index
    %10 = vector.load %arg1[%c0_3, %9, %c0_4] : memref<2x12x8xf32, #tpu.memory_space<vmem>>, vector<2x8x8xf32>
    %c3_i32 = arith.constant 3 : i32
    %11 = arith.addi %1, %c3_i32 : i32
    %c0_5 = arith.constant 0 : index
    %12 = arith.index_cast %11 : i32 to index
    %c0_6 = arith.constant 0 : index
    %13 = vector.load %arg1[%c0_5, %12, %c0_6] : memref<2x12x8xf32, #tpu.memory_space<vmem>>, vector<2x8x8xf32>
    %c4_i32 = arith.constant 4 : i32
    %14 = arith.addi %1, %c4_i32 : i32
    %c0_7 = arith.constant 0 : index
    %15 = arith.index_cast %14 : i32 to index
    %c0_8 = arith.constant 0 : index
    %16 = vector.load %arg1[%c0_7, %15, %c0_8] : memref<2x12x8xf32, #tpu.memory_space<vmem>>, vector<2x8x8xf32>
    %17 = tpu.concatenate %4, %7, %10, %13, %16 in 2 : vector<2x8x8xf32>, vector<2x8x8xf32>, vector<2x8x8xf32>, vector<2x8x8xf32>, vector<2x8x8xf32> -> vector<2x8x40xf32>
    %18 = vector.shape_cast %17 : vector<2x8x40xf32> to vector<16x40xf32>
    %c0_9 = arith.constant 0 : index
    %c0_10 = arith.constant 0 : index
    %19 = vector.load %arg2[%c0_9, %c0_10] : memref<40x8xf32, #tpu.memory_space<vmem>>, vector<40x8xf32>
    %cst = arith.constant dense<0.000000e+00> : vector<16x8xf32>
    %20 = tpu.matmul %18, %19, %cst {dimension_numbers = #tpu.dot_dimension_numbers<[1], [0], [0], [1], [0, 0, 1, 1], [], []>} : vector<16x40xf32>, vector<40x8xf32>, vector<16x8xf32> -> vector<16x8xf32>
    %21 = vector.shape_cast %20 : vector<16x8xf32> to vector<2x8x8xf32>
    %c0_11 = arith.constant 0 : index
    %c0_12 = arith.constant 0 : index
    %c0_13 = arith.constant 0 : index
    %22 = vector.load %arg3[%c0_11, %c0_12, %c0_13] : memref<1x1x8xf32, #tpu.memory_space<vmem>>, vector<1x1x8xf32>
    %23 = vector.broadcast %22 : vector<1x1x8xf32> to vector<2x8x8xf32>
    %24 = arith.addf %21, %23 : vector<2x8x8xf32>
    %c0_14 = arith.constant 0 : index
    %c0_15 = arith.constant 0 : index
    %c0_16 = arith.constant 0 : index
    %25 = vector.load %arg4[%c0_14, %c0_15, %c0_16] : memref<2x8x8xf32, #tpu.memory_space<vmem>>, vector<2x8x8xf32>
    tpu.vector_store %arg4[%c0_14, %c0_15, %c0_16], %24 {strides = array<i32>} : memref<2x8x8xf32, #tpu.memory_space<vmem>>, vector<2x8x8xf32>,
    return
  }
  func.func @transform_0(%arg0: i32) -> (i32, i32, i32) {
    %c0_i32 = arith.constant 0 : i32
    %c0_i32_0 = arith.constant 0 : i32
    %c0_i32_1 = arith.constant 0 : i32
    %c0_i32_2 = arith.constant 0 : i32
    return %c0_i32, %c0_i32_0, %c0_i32_1 : i32, i32, i32
  }
  func.func @transform_1(%arg0: i32) -> (i32, i32) {
    %c0_i32 = arith.constant 0 : i32
    %c0_i32_0 = arith.constant 0 : i32
    %c0_i32_1 = arith.constant 0 : i32
    return %c0_i32, %c0_i32_0 : i32, i32
  }
  func.func @transform_2(%arg0: i32) -> (i32, i32, i32) {
    %c0_i32 = arith.constant 0 : i32
    %c0_i32_0 = arith.constant 0 : i32
    %c0_i32_1 = arith.constant 0 : i32
    %c0_i32_2 = arith.constant 0 : i32
    return %c0_i32, %c0_i32_0, %c0_i32_1 : i32, i32, i32
  }
  func.func @transform_3(%arg0: i32) -> (i32, i32, i32) {
    %c0_i32 = arith.constant 0 : i32
    %c0_i32_0 = arith.constant 0 : i32
    %c0_i32_1 = arith.constant 0 : i32
    return %c0_i32, %arg0, %c0_i32_0 : i32, i32, i32
  }
}

</mosaic_0001>

<llo_original>
// kernel: tpu_custom_call.1
$region0: #{tpu_custom_call.1}
  #allocation0 [shape = 'u32[]', space=smem, size = 0x4, offset = 0x4, fixed_abs, tag = 'smem constant byte address 0x4 - core index']
  #allocation1 [shape = 'u32[72,128]{1,0:T(1,128)}', space=vmem, size = 0x9000, scoped, tag = 'internal scratch']
  %s0 = inlined_call_operand.vmem [shape: f32[2,12,8], index: 0, kind: input, shape index: {}]
  %s1 = inlined_call_operand.vmem [shape: f32[40,8], index: 1, kind: input, shape index: {}]
  %s2 = inlined_call_operand.vmem [shape: f32[1,1,8], index: 2, kind: input, shape index: {}]
  %s3 = inlined_call_operand.hbm [shape: f32[2,8,8], index: 3, kind: output, shape index: {}]
  %s4 = sld [smem:[#allocation0]]
  $region22: #{tpu_custom_call.1} parent=0
    _
  %s6 = ssub.s32 1, %s4
  %s7 = scalar_select 0, %s6, %s4
  $region1: #{tpu_custom_call.1} parent=0
    #allocation2 [shape = 'u8[8192]{0}', space=vmem, size = 0x2000, scoped, tag = 'output window, operand 0, single buffered']
    #allocation3 [shape = 's32[1]{0}', space=sflag, size = 0x4, scoped, tag = 'scoped memory for tpu_custom_call.1']
    %8 = vsyncpa [#allocation3], 0
    // Predicated region
    $region2: #{tpu_custom_call.1} parent=1 // pred_check
      _
    $region3: #{tpu_custom_call.1} parent=1 // pred_check_branch
      %10 = sbr.rel (0) target = $region5
    $region4: #{tpu_custom_call.1} parent=1 // pred_region
      _
    $region5: #{tpu_custom_call.1} parent=1 // pred_fallthru
      _
    // Predicated region
    $region6: #{tpu_custom_call.1} parent=1 // pred_check
      _
    $region7: #{tpu_custom_call.1} parent=1 // pred_check_branch
      %12 = sbr.rel (0) target = $region9
    $region8: #{tpu_custom_call.1} parent=1 // pred_region
      _
    $region9: #{tpu_custom_call.1} parent=1 // pred_fallthru
      _
    // Predicated region
    $region10: #{tpu_custom_call.1} parent=1 // pred_check
      _
    $region11: #{tpu_custom_call.1} parent=1 // pred_check_branch
      %14 = sbr.rel (0) target = $region13
    $region12: #{tpu_custom_call.1} parent=1 // pred_region
      _
    $region13: #{tpu_custom_call.1} parent=1 // pred_fallthru
      _
    %s15 = smul.u32 0, 8
    %s16 = scalar_lea.vmem %s0, %s15
    %v17 = vld [vmem:[%s16] sm:$0xff]
    %v18 = vld [vmem:[%s16 + $0x10] sm:$0xff]
    %s19 = sadd.s32 %s15, 1
    %s20 = scalar_lea.vmem %s0, %s19
    %v21 = vld [vmem:[%s20] sm:$0xff]
    %v22 = vld [vmem:[%s20 + $0x10] sm:$0xff]
    %s23 = sadd.s32 %s15, 2
    %s24 = scalar_lea.vmem %s0, %s23
    %v25 = vld [vmem:[%s24] sm:$0xff]
    %v26 = vld [vmem:[%s24 + $0x10] sm:$0xff]
    %s27 = sadd.s32 %s15, 3
    %s28 = scalar_lea.vmem %s0, %s27
    %v29 = vld [vmem:[%s28] sm:$0xff]
    %v30 = vld [vmem:[%s28 + $0x10] sm:$0xff]
    %s31 = sadd.s32 %s15, 4
    %s32 = scalar_lea.vmem %s0, %s31
    %v33 = vld [vmem:[%s32] sm:$0xff]
    %v34 = vld [vmem:[%s32 + $0x10] sm:$0xff]
    %37 = vrot.lane.b32.xlu0 %v21, 8
    %v38 = vpop.permute.xlu0 %37
    %39 = vrot.lane.b32.xlu0 %v22, 8
    %v40 = vpop.permute.xlu0 %39
    %45 = vrot.lane.b32.xlu0 %v25, 16
    %v46 = vpop.permute.xlu0 %45
    %47 = vrot.lane.b32.xlu0 %v26, 16
    %v48 = vpop.permute.xlu0 %47
    %53 = vrot.lane.b32.xlu0 %v29, 24
    %v54 = vpop.permute.xlu0 %53
    %55 = vrot.lane.b32.xlu0 %v30, 24
    %v56 = vpop.permute.xlu0 %55
    %61 = vrot.lane.b32.xlu0 %v33, 32
    %v62 = vpop.permute.xlu0 %61
    %63 = vrot.lane.b32.xlu0 %v34, 32
    %v64 = vpop.permute.xlu0 %63
    %vm67 = vcmask 64512
    %v68 = vsel %vm67, %v17, %v38
    %v69 = vsel %vm67, %v18, %v40
    %vm70 = vcmask 130048
    %v71 = vsel %vm70, %v68, %v46
    %v72 = vsel %vm70, %v69, %v48
    %vm73 = vcmask 195584
    %v74 = vsel %vm73, %v71, %v54
    %v75 = vsel %vm73, %v72, %v56
    %vm76 = vcmask 261120
    %v77 = vsel %vm76, %v74, %v62
    %v78 = vsel %vm76, %v75, %v64
    %v79 = vld [vmem:[%s1] sm:$0xff]
    %v80 = vld [vmem:[%s1 + $0x8] sm:$0xff]
    %v81 = vld [vmem:[%s1 + $0x10] sm:$0xff]
    %v82 = vld [vmem:[%s1 + $0x18] sm:$0xff]
    %v83 = vld [vmem:[%s1 + $0x20] sm:$0xff]
    %vm84 = vcmask 326656
    %v86 = vsel %vm84, %v77, 0
    %v89 = vsel %vm84, %v78, 0
    %91 = vmatpush.msra.mxu0 0.0
    %92 = vmatpush.msra.mxu0 0.0
    %93 = vmatpush.msra.mxu0 0.0
    %94 = vmatpush.msra.mxu0 0.0
    %95 = vmatpush.msra.mxu0 0.0
    %96 = vmatpush.msra.mxu0 0.0
    %97 = vmatpush.msra.mxu0 0.0
    %98 = vmatpush.msra.mxu0 0.0
    %99 = vmatpush.msra.mxu0 0.0
    %100 = vmatpush.msra.mxu0 0.0
    %101 = vmatpush.msra.mxu0 0.0
    %102 = vmatpush.msra.mxu0 %v83
    %103 = vmatpush.msra.mxu0 %v82
    %104 = vmatpush.msra.mxu0 %v81
    %105 = vmatpush.msra.mxu0 %v80
    %106 = vmatpush.msra.mxu0 %v79
    %107 = vmatmul.f32.gmra.mxu0 %v86
    %v108 = vpop.f32.mrf.mxu0
    %v109 = vadd.f32 0.0, %v108
    %110 = vmatmul.f32.gmra.mxu0 %v89
    %v111 = vpop.f32.mrf.mxu0
    %v112 = vadd.f32 0.0, %v111
    %113 = vdwg.mxu0
    %v114 = vld [vmem:[%s2] sm:$0x1]
    %v116 = vperm.slane %v114, 0
    %v118 = vadd.f32 %v109, %v116
    %v119 = vadd.f32 %v112, %v116
    %120 = vst.msk [vmem:[#allocation2] sm:$0xff] %vm67, %v118
    %121 = vst.msk [vmem:[#allocation2 + $0x8] sm:$0xff] %vm67, %v119
    // Predicated region
    $region14: #{tpu_custom_call.1} parent=1 // pred_check
      _
    $region15: #{tpu_custom_call.1} parent=1 // pred_check_branch
      %123 = sbr.rel (0) target = $region17
    $region16: #{tpu_custom_call.1} parent=1 // pred_region
      %125 = vsyncadd [#allocation3], 0
      %s126 = sshll.u32 [#allocation2], 4
      %s127 = int_to_ptr.vmem [resolvable:$true] %s126
      %s128 = sshll.u32 %s3, 4
      %s129 = int_to_ptr.hbm [resolvable:$true] %s128
      %134 = dma.vmem_to_hbm [thread:$0]  %s127, 256, %s129, [#allocation3], 128, 128, 8
    $region17: #{tpu_custom_call.1} parent=1 // pred_fallthru
      _
    // Predicated region
    $region18: #{tpu_custom_call.1} parent=1 // pred_check
      _
    $region19: #{tpu_custom_call.1} parent=1 // pred_check_branch
      %136 = sbr.rel (0) target = $region21
    $region20: #{tpu_custom_call.1} parent=1 // pred_region
      %138 = dma.done [#allocation3], 256
    $region21: #{tpu_custom_call.1} parent=1 // pred_fallthru
      _
    %139 = vsyncpa [#allocation3], 1

</llo_original>
